<compile_context>
chip_gen: v7x
topology: tpu7x:2x2x1
jax: 0.10.0
libtpu: 0.0.40
codegen_flags: <defaults>
</compile_context>

<pallas_src>
import numpy as np
import jax
import jax.numpy as jnp
from jax.experimental import pallas as pl


OUTCHANNEL = 64       # fixed by CNN_Classifier (self.outchannel = 64)
BN_EPS = 1e-5         # nn.BatchNorm2d default eps


# ----------------------------------------------------------------------------
# Fused forward kernel: everything VMEM-resident, single invocation (no grid).
# ----------------------------------------------------------------------------
def _cnn_classifier_kernel(x_ref, w1_ref, b1_ref, g_ref, be_ref, pool_ref,
                           w2_ref, b2_ref, o_ref):
    # x_ref: (Cin, M) with M = B*H*W on lanes (lane-dense).
    x = x_ref[...]

    # conv1 (1x1) == per-pixel matmul: (64, Cin) @ (Cin, M) -> (64, M)
    y = jnp.dot(w1_ref[...], x, preferred_element_type=jnp.float32)
    y = y + b1_ref[...]                                   # bias, (64,1) lane-broadcast

    # BatchNorm2d, training-mode batch statistics over (B, H, W) == the lane axis.
    mu = jnp.mean(y, axis=1, keepdims=True)               # (64, 1)
    var = jnp.mean(y * y, axis=1, keepdims=True) - mu * mu  # biased variance
    y = (y - mu) * jax.lax.rsqrt(var + BN_EPS)
    y = y * g_ref[...] + be_ref[...]                       # affine

    # ReLU
    y = jnp.maximum(y, 0.0)

    # AdaptiveAvgPool2d(1): per-batch spatial mean via block-diagonal (M, B) matrix.
    pooled = jnp.dot(y, pool_ref[...], preferred_element_type=jnp.float32)   # (64, B)

    # conv2 (1x1 on 1x1 spatial) == (Classes, 64) @ (64, B) + bias -> (Classes, B)
    out = jnp.dot(w2_ref[...], pooled, preferred_element_type=jnp.float32) + b2_ref[...]
    o_ref[...] = out.astype(o_ref.dtype)


def cnn_classifier_forward(params, x_nchw):
    """x_nchw: (B, Cin, H, W) float32 -> logits (B, Classes)."""
    B, Cin, H, W = x_nchw.shape
    M = B * H * W
    classes = params["w2"].shape[0]

    # Layout plumbing: NCHW -> (Cin, B*H*W); lane dim = batch*spatial (b-major).
    xT = jnp.transpose(x_nchw, (1, 0, 2, 3)).reshape(Cin, M).astype(jnp.float32)

    # Per-batch averaging matrix (M, B): column b has 1/(H*W) on rows b*HW..(b+1)*HW-1.
    pool = jnp.repeat(jnp.eye(B, dtype=jnp.float32), H * W, axis=0) / float(H * W)

    out_t = pl.pallas_call(
        _cnn_classifier_kernel,
        out_shape=jax.ShapeDtypeStruct((classes, B), jnp.float32),
    )(xT, params["w1"], params["b1"], params["gamma"], params["beta"],
      pool, params["w2"], params["b2"])

    return out_t.T                                        # (B, Classes) == x.view(B, -1)


# ----------------------------------------------------------------------------
# Parameters (PyTorch-like defaults: BN gamma=1, beta=0)
# ----------------------------------------------------------------------------
def init_params(key, cin, classes):
    k1, k2, k3, k4 = jax.random.split(key, 4)
    w1 = jax.random.normal(k1, (OUTCHANNEL, cin), jnp.float32) / np.sqrt(cin)
    b1 = 0.01 * jax.random.normal(k2, (OUTCHANNEL, 1), jnp.float32)
    gamma = jnp.ones((OUTCHANNEL, 1), jnp.float32)
    beta = jnp.zeros((OUTCHANNEL, 1), jnp.float32)
    w2 = jax.random.normal(k3, (classes, OUTCHANNEL), jnp.float32) / np.sqrt(OUTCHANNEL)
    b2 = 0.01 * jax.random.normal(k4, (classes, 1), jnp.float32)
    return dict(w1=w1, b1=b1, gamma=gamma, beta=beta, w2=w2, b2=b2)


# ----------------------------------------------------------------------------
# Pure-JAX reference (same math) for a silent correctness check.
# ----------------------------------------------------------------------------
def reference_forward(params, x_nchw):
    x = x_nchw.astype(jnp.float32)
    y = jnp.einsum("oc,bchw->bohw", params["w1"], x) + params["b1"].reshape(1, -1, 1, 1)
    mu = jnp.mean(y, axis=(0, 2, 3), keepdims=True)
    var = jnp.mean(y * y, axis=(0, 2, 3), keepdims=True) - mu * mu
    y = (y - mu) * jax.lax.rsqrt(var + BN_EPS)
    y = y * params["gamma"].reshape(1, -1, 1, 1) + params["beta"].reshape(1, -1, 1, 1)
    y = jnp.maximum(y, 0.0)
    pooled = jnp.mean(y, axis=(2, 3))                               # (B, 64)
    out = pooled @ params["w2"].T + params["b2"].reshape(1, -1)     # (B, Classes)
    return out


if __name__ == "__main__":
    B, CIN, CLASSES, H, W = 2, 4, 10, 16, 16
    key = jax.random.PRNGKey(0)
    kp, kx = jax.random.split(key)
    params = init_params(kp, CIN, CLASSES)
    x = jax.random.normal(kx, (B, CIN, H, W), jnp.float32)          # NCHW, like PyTorch

    fwd = jax.jit(cnn_classifier_forward)
    out = fwd(params, x)
    jax.block_until_ready(out)

    ref = reference_forward(params, x)
    np.testing.assert_allclose(np.asarray(out), np.asarray(ref), rtol=2e-3, atol=2e-3)

    print("KERNEL_OK")
</pallas_src>

<mosaic_0001>
module attributes {stable_mosaic.version = 11 : i64} {
  func.func @_cnn_classifier_kernel(%arg0: memref<4x512xf32, #tpu.memory_space<vmem>>, %arg1: memref<64x4xf32, #tpu.memory_space<vmem>>, %arg2: memref<64x1xf32, #tpu.memory_space<vmem>>, %arg3: memref<64x1xf32, #tpu.memory_space<vmem>>, %arg4: memref<64x1xf32, #tpu.memory_space<vmem>>, %arg5: memref<512x2xf32, #tpu.memory_space<vmem>>, %arg6: memref<10x64xf32, #tpu.memory_space<vmem>>, %arg7: memref<10x1xf32, #tpu.memory_space<vmem>>, %arg8: memref<10x2xf32, #tpu.memory_space<vmem>>) attributes {dimension_semantics = [], scalar_prefetch = 0 : i64, scratch_operands = 0 : i64, tpu.core_type = #tpu.core_type<tc>} {
    %c0 = arith.constant 0 : index
    %c0_0 = arith.constant 0 : index
    %0 = vector.load %arg0[%c0, %c0_0] : memref<4x512xf32, #tpu.memory_space<vmem>>, vector<4x512xf32>
    %c0_1 = arith.constant 0 : index
    %c0_2 = arith.constant 0 : index
    %1 = vector.load %arg1[%c0_1, %c0_2] : memref<64x4xf32, #tpu.memory_space<vmem>>, vector<64x4xf32>
    %cst = arith.constant dense<0.000000e+00> : vector<64x512xf32>
    %2 = tpu.matmul %1, %0, %cst {dimension_numbers = #tpu.dot_dimension_numbers<[1], [0], [0], [1], [0, 0, 1, 1], [], []>} : vector<64x4xf32>, vector<4x512xf32>, vector<64x512xf32> -> vector<64x512xf32>
    %c0_3 = arith.constant 0 : index
    %c0_4 = arith.constant 0 : index
    %3 = vector.load %arg2[%c0_3, %c0_4] : memref<64x1xf32, #tpu.memory_space<vmem>>, vector<64x1xf32>
    %4 = vector.broadcast %3 : vector<64x1xf32> to vector<64x512xf32>
    %5 = arith.addf %2, %4 : vector<64x512xf32>
    %cst_5 = arith.constant dense<0.000000e+00> : vector<64xf32>
    %6 = vector.multi_reduction <add>, %5, %cst_5 [1] : vector<64x512xf32> to vector<64xf32>
    %7 = vector.shape_cast %6 : vector<64xf32> to vector<64x1xf32>
    %cst_6 = arith.constant 5.120000e+02 : f32
    %8 = vector.broadcast %cst_6 : f32 to vector<64x1xf32>
    %9 = arith.divf %7, %8 : vector<64x1xf32>
    %10 = arith.mulf %5, %5 : vector<64x512xf32>
    %cst_7 = arith.constant dense<0.000000e+00> : vector<64xf32>
    %11 = vector.multi_reduction <add>, %10, %cst_7 [1] : vector<64x512xf32> to vector<64xf32>
    %12 = vector.shape_cast %11 : vector<64xf32> to vector<64x1xf32>
    %cst_8 = arith.constant 5.120000e+02 : f32
    %13 = vector.broadcast %cst_8 : f32 to vector<64x1xf32>
    %14 = arith.divf %12, %13 : vector<64x1xf32>
    %15 = arith.mulf %9, %9 : vector<64x1xf32>
    %16 = arith.subf %14, %15 : vector<64x1xf32>
    %17 = vector.broadcast %9 : vector<64x1xf32> to vector<64x512xf32>
    %18 = arith.subf %5, %17 : vector<64x512xf32>
    %cst_9 = arith.constant 9.99999974E-6 : f32
    %19 = vector.broadcast %cst_9 : f32 to vector<64x1xf32>
    %20 = arith.addf %16, %19 : vector<64x1xf32>
    %21 = math.rsqrt %20 : vector<64x1xf32>
    %22 = vector.broadcast %21 : vector<64x1xf32> to vector<64x512xf32>
    %23 = arith.mulf %18, %22 : vector<64x512xf32>
    %c0_10 = arith.constant 0 : index
    %c0_11 = arith.constant 0 : index
    %24 = vector.load %arg3[%c0_10, %c0_11] : memref<64x1xf32, #tpu.memory_space<vmem>>, vector<64x1xf32>
    %25 = vector.broadcast %24 : vector<64x1xf32> to vector<64x512xf32>
    %26 = arith.mulf %23, %25 : vector<64x512xf32>
    %c0_12 = arith.constant 0 : index
    %c0_13 = arith.constant 0 : index
    %27 = vector.load %arg4[%c0_12, %c0_13] : memref<64x1xf32, #tpu.memory_space<vmem>>, vector<64x1xf32>
    %28 = vector.broadcast %27 : vector<64x1xf32> to vector<64x512xf32>
    %29 = arith.addf %26, %28 : vector<64x512xf32>
    %cst_14 = arith.constant 0.000000e+00 : f32
    %30 = vector.broadcast %cst_14 : f32 to vector<64x512xf32>
    %31 = arith.maximumf %29, %30 : vector<64x512xf32>
    %c0_15 = arith.constant 0 : index
    %c0_16 = arith.constant 0 : index
    %32 = vector.load %arg5[%c0_15, %c0_16] : memref<512x2xf32, #tpu.memory_space<vmem>>, vector<512x2xf32>
    %cst_17 = arith.constant dense<0.000000e+00> : vector<64x2xf32>
    %33 = tpu.matmul %31, %32, %cst_17 {dimension_numbers = #tpu.dot_dimension_numbers<[1], [0], [0], [1], [0, 0, 1, 1], [], []>} : vector<64x512xf32>, vector<512x2xf32>, vector<64x2xf32> -> vector<64x2xf32>
    %c0_18 = arith.constant 0 : index
    %c0_19 = arith.constant 0 : index
    %34 = vector.load %arg6[%c0_18, %c0_19] : memref<10x64xf32, #tpu.memory_space<vmem>>, vector<10x64xf32>
    %cst_20 = arith.constant dense<0.000000e+00> : vector<10x2xf32>
    %35 = tpu.matmul %34, %33, %cst_20 {dimension_numbers = #tpu.dot_dimension_numbers<[1], [0], [0], [1], [0, 0, 1, 1], [], []>} : vector<10x64xf32>, vector<64x2xf32>, vector<10x2xf32> -> vector<10x2xf32>
    %c0_21 = arith.constant 0 : index
    %c0_22 = arith.constant 0 : index
    %36 = vector.load %arg7[%c0_21, %c0_22] : memref<10x1xf32, #tpu.memory_space<vmem>>, vector<10x1xf32>
    %37 = vector.broadcast %36 : vector<10x1xf32> to vector<10x2xf32>
    %38 = arith.addf %35, %37 : vector<10x2xf32>
    %c0_23 = arith.constant 0 : index
    %c0_24 = arith.constant 0 : index
    %39 = vector.load %arg8[%c0_23, %c0_24] : memref<10x2xf32, #tpu.memory_space<vmem>>, vector<10x2xf32>
    tpu.vector_store %arg8[%c0_23, %c0_24], %38 {strides = array<i32>} : memref<10x2xf32, #tpu.memory_space<vmem>>, vector<10x2xf32>,
    return
  }
}

</mosaic_0001>

<llo_original>
// kernel: cnn_classifier_forward.1
$region0: #{cnn_classifier_forward.1}
  #allocation0 [shape = 'u32[]', space=smem, size = 0x4, offset = 0x4, fixed_abs, tag = 'smem constant byte address 0x4 - core index']
  #allocation1 [shape = 'u32[144,128]{1,0:T(1,128)}', space=vmem, size = 0x12000, scoped, tag = 'internal scratch']
  %s0 = inlined_call_operand.vmem [shape: f32[4,512], index: 0, kind: input, shape index: {}]
  %s1 = inlined_call_operand.vmem [shape: f32[64,4], index: 1, kind: input, shape index: {}]
  %s2 = inlined_call_operand.vmem [shape: f32[64,1], index: 2, kind: input, shape index: {}]
  %s3 = inlined_call_operand.vmem [shape: f32[64,1], index: 3, kind: input, shape index: {}]
  %s4 = inlined_call_operand.vmem [shape: f32[64,1], index: 4, kind: input, shape index: {}]
  %s5 = inlined_call_operand.vmem [shape: f32[512,2], index: 5, kind: input, shape index: {}]
  %s6 = inlined_call_operand.vmem [shape: f32[10,64], index: 6, kind: input, shape index: {}]
  %s7 = inlined_call_operand.vmem [shape: f32[10,1], index: 7, kind: input, shape index: {}]
  %s8 = inlined_call_operand.vmem [shape: f32[10,2], index: 8, kind: output, shape index: {}]
  %s9 = sld [smem:[#allocation0]]
  $region42: #{cnn_classifier_forward.1} parent=0
    _
  %s11 = ssub.s32 1, %s9
  %s12 = scalar_select 0, %s11, %s9
  // Predicated region
  $region2: #{cnn_classifier_forward.1} parent=0 // pred_check
    _
  $region3: #{cnn_classifier_forward.1} parent=0 // pred_check_branch
    %14 = sbr.rel (0) target = $region5
  $region4: #{cnn_classifier_forward.1} parent=0 // pred_region
    _
  $region5: #{cnn_classifier_forward.1} parent=0 // pred_fallthru
    _
  // Predicated region
  $region6: #{cnn_classifier_forward.1} parent=0 // pred_check
    _
  $region7: #{cnn_classifier_forward.1} parent=0 // pred_check_branch
    %16 = sbr.rel (0) target = $region9
  $region8: #{cnn_classifier_forward.1} parent=0 // pred_region
    _
  $region9: #{cnn_classifier_forward.1} parent=0 // pred_fallthru
    _
  // Predicated region
  $region10: #{cnn_classifier_forward.1} parent=0 // pred_check
    _
  $region11: #{cnn_classifier_forward.1} parent=0 // pred_check_branch
    %18 = sbr.rel (0) target = $region13
  $region12: #{cnn_classifier_forward.1} parent=0 // pred_region
    _
  $region13: #{cnn_classifier_forward.1} parent=0 // pred_fallthru
    _
  // Predicated region
  $region14: #{cnn_classifier_forward.1} parent=0 // pred_check
    _
  $region15: #{cnn_classifier_forward.1} parent=0 // pred_check_branch
    %20 = sbr.rel (0) target = $region17
  $region16: #{cnn_classifier_forward.1} parent=0 // pred_region
    _
  $region17: #{cnn_classifier_forward.1} parent=0 // pred_fallthru
    _
  // Predicated region
  $region18: #{cnn_classifier_forward.1} parent=0 // pred_check
    _
  $region19: #{cnn_classifier_forward.1} parent=0 // pred_check_branch
    %22 = sbr.rel (0) target = $region21
  $region20: #{cnn_classifier_forward.1} parent=0 // pred_region
    _
  $region21: #{cnn_classifier_forward.1} parent=0 // pred_fallthru
    _
  // Predicated region
  $region22: #{cnn_classifier_forward.1} parent=0 // pred_check
    _
  $region23: #{cnn_classifier_forward.1} parent=0 // pred_check_branch
    %24 = sbr.rel (0) target = $region25
  $region24: #{cnn_classifier_forward.1} parent=0 // pred_region
    _
  $region25: #{cnn_classifier_forward.1} parent=0 // pred_fallthru
    _
  // Predicated region
  $region26: #{cnn_classifier_forward.1} parent=0 // pred_check
    _
  $region27: #{cnn_classifier_forward.1} parent=0 // pred_check_branch
    %26 = sbr.rel (0) target = $region29
  $region28: #{cnn_classifier_forward.1} parent=0 // pred_region
    _
  $region29: #{cnn_classifier_forward.1} parent=0 // pred_fallthru
    _
  // Predicated region
  $region30: #{cnn_classifier_forward.1} parent=0 // pred_check
    _
  $region31: #{cnn_classifier_forward.1} parent=0 // pred_check_branch
    %28 = sbr.rel (0) target = $region33
  $region32: #{cnn_classifier_forward.1} parent=0 // pred_region
    _
  $region33: #{cnn_classifier_forward.1} parent=0 // pred_fallthru
    _
  %v29 = vld [vmem:[%s0] sm:$0xff]
  %v30 = vld [vmem:[%s0 + $0x8] sm:$0xff]
  %v31 = vld [vmem:[%s1] sm:$0xff]
  %v32 = vld [vmem:[%s1 + $0x8] sm:$0xff]
  %v33 = vld [vmem:[%s1 + $0x10] sm:$0xff]
  %v34 = vld [vmem:[%s1 + $0x18] sm:$0xff]
  %v35 = vld [vmem:[%s1 + $0x20] sm:$0xff]
  %v36 = vld [vmem:[%s1 + $0x28] sm:$0xff]
  %v37 = vld [vmem:[%s1 + $0x30] sm:$0xff]
  %v38 = vld [vmem:[%s1 + $0x38] sm:$0xff]
  %v39 = vld [vmem:[%s2] sm:$0xff]
  %v40 = vld [vmem:[%s2 + $0x8] sm:$0xff]
  %v41 = vld [vmem:[%s2 + $0x10] sm:$0xff]
  %v42 = vld [vmem:[%s2 + $0x18] sm:$0xff]
  %v43 = vld [vmem:[%s2 + $0x20] sm:$0xff]
  %v44 = vld [vmem:[%s2 + $0x28] sm:$0xff]
  %v45 = vld [vmem:[%s2 + $0x30] sm:$0xff]
  %v46 = vld [vmem:[%s2 + $0x38] sm:$0xff]
  %48 = vset.pattern.permute.xlu0 0
  %49 = vperm.xlu0 %48, %v39
  %v50 = vpop.permute.xlu0 %49
  %53 = vset.pattern.permute.xlu0 0
  %54 = vperm.xlu0 %53, %v40
  %v55 = vpop.permute.xlu0 %54
  %58 = vset.pattern.permute.xlu0 0
  %59 = vperm.xlu0 %58, %v41
  %v60 = vpop.permute.xlu0 %59
  %63 = vset.pattern.permute.xlu0 0
  %64 = vperm.xlu0 %63, %v42
  %v65 = vpop.permute.xlu0 %64
  %68 = vset.pattern.permute.xlu0 0
  %69 = vperm.xlu0 %68, %v43
  %v70 = vpop.permute.xlu0 %69
  %73 = vset.pattern.permute.xlu0 0
  %74 = vperm.xlu0 %73, %v44
  %v75 = vpop.permute.xlu0 %74
  %78 = vset.pattern.permute.xlu0 0
  %79 = vperm.xlu0 %78, %v45
  %v80 = vpop.permute.xlu0 %79
  %83 = vset.pattern.permute.xlu0 0
  %84 = vperm.xlu0 %83, %v46
  %v85 = vpop.permute.xlu0 %84
  %v89 = vcombine.high %v29, %v29
  %v90 = vcombine.high %v30, %v30
  %vm91 = vcmask 31744
  %v93 = vsel %vm91, %v31, 0
  %v96 = vsel %vm91, %v32, 0
  %v99 = vsel %vm91, %v33, 0
  %v102 = vsel %vm91, %v34, 0
  %v105 = vsel %vm91, %v35, 0
  %v108 = vsel %vm91, %v36, 0
  %v111 = vsel %vm91, %v37, 0
  %v114 = vsel %vm91, %v38, 0
  %vm116 = vcmask 1043456
  %v117 = vsel %vm116, %v29, 0
  %v119 = vsel %vm116, %v89, 0
  %v121 = vsel %vm116, %v30, 0
  %v123 = vsel %vm116, %v90, 0
  %125 = vmatprep.subr.mxu0 %v119
  %126 = vmatpush1.msra.mxu0 %v117
  %127 = vmatprep.subr.mxu0 0.0
  %128 = vmatpush1.msra.mxu0 0.0
  %129 = vmatprep.subr.mxu0 0.0
  %130 = vmatpush1.msra.mxu0 0.0
  %131 = vmatprep.subr.mxu0 0.0
  %132 = vmatpush1.msra.mxu0 0.0
  %133 = vmatprep.subr.mxu0 0.0
  %134 = vmatpush1.msra.mxu0 0.0
  %135 = vmatprep.subr.mxu0 0.0
  %136 = vmatpush1.msra.mxu0 0.0
  %137 = vmatprep.subr.mxu0 0.0
  %138 = vmatpush1.msra.mxu0 0.0
  %139 = vmatprep.subr.mxu0 0.0
  %140 = vmatpush1.msra.mxu0 0.0
  %141 = vmatprep.subr.mxu0 0.0
  %142 = vmatpush1.msra.mxu0 0.0
  %143 = vmatprep.subr.mxu0 0.0
  %144 = vmatpush1.msra.mxu0 0.0
  %145 = vmatprep.subr.mxu0 0.0
  %146 = vmatpush1.msra.mxu0 0.0
  %147 = vmatprep.subr.mxu0 0.0
  %148 = vmatpush1.msra.mxu0 0.0
  %149 = vmatprep.subr.mxu0 0.0
  %150 = vmatpush1.msra.mxu0 0.0
  %151 = vmatprep.subr.mxu0 0.0
  %152 = vmatpush1.msra.mxu0 0.0
  %153 = vmatprep.subr.mxu0 0.0
  %154 = vmatpush1.msra.mxu0 0.0
  %155 = vmatprep.subr.mxu0 0.0
  %156 = vmatpush1.msra.mxu0 0.0
  %157 = vmatprep.subr.mxu0 0.0
  %158 = vmatpush1.msra.mxu0 0.0
  %159 = vmatprep.subr.mxu0 0.0
  %160 = vmatpush1.msra.mxu0 0.0
  %161 = vmatprep.subr.mxu0 0.0
  %162 = vmatpush1.msra.mxu0 0.0
  %163 = vmatprep.subr.mxu0 0.0
  %164 = vmatpush1.msra.mxu0 0.0
  %165 = vmatprep.subr.mxu0 0.0
  %166 = vmatpush1.msra.mxu0 0.0
  %167 = vmatprep.subr.mxu0 0.0
  %168 = vmatpush1.msra.mxu0 0.0
  %169 = vmatprep.subr.mxu0 0.0
  %170 = vmatpush1.msra.mxu0 0.0
  %171 = vmatprep.subr.mxu0 0.0
  %172 = vmatpush1.msra.mxu0 0.0
  %173 = vmatprep.subr.mxu0 0.0
  %174 = vmatpush1.msra.mxu0 0.0
  %175 = vmatprep.subr.mxu0 0.0
  %176 = vmatpush1.msra.mxu0 0.0
  %177 = vmatprep.subr.mxu0 0.0
  %178 = vmatpush1.msra.mxu0 0.0
  %179 = vmatprep.subr.mxu0 0.0
  %180 = vmatpush1.msra.mxu0 0.0
  %181 = vmatprep.subr.mxu0 0.0
  %182 = vmatpush1.msra.mxu0 0.0
  %183 = vmatprep.subr.mxu0 0.0
  %184 = vmatpush1.msra.mxu0 0.0
  %185 = vmatprep.subr.mxu0 0.0
  %186 = vmatpush1.msra.mxu0 0.0
  %187 = vmatprep.subr.mxu0 0.0
  %188 = vmatpush1.msra.mxu0 0.0
  %189 = vmatprep.mubr.f32.mxu0 0.0
  %190 = vmatmul.mubr.f32.gmra.mrb[0].mxu0 %v93
  %v191 = vpop.f32.mrb[0].mxu0
  %v192 = vadd.f32 %v50, %v191
  %v193 = vpop.f32.mrb[0].mxu0
  %v194 = vadd.f32 %v50, %v193
  %195 = vmatprep.mubr.f32.mxu0 0.0
  %196 = vmatmul.mubr.f32.gmra.mrb[0].mxu0 %v96
  %v197 = vpop.f32.mrb[0].mxu0
  %v198 = vadd.f32 %v55, %v197
  %v199 = vpop.f32.mrb[0].mxu0
  %v200 = vadd.f32 %v55, %v199
  %201 = vmatprep.mubr.f32.mxu0 0.0
  %202 = vmatmul.mubr.f32.gmra.mrb[0].mxu0 %v99
  %v203 = vpop.f32.mrb[0].mxu0
  %v204 = vadd.f32 %v60, %v203
  %v205 = vpop.f32.mrb[0].mxu0
  %v206 = vadd.f32 %v60, %v205
  %207 = vmatprep.mubr.f32.mxu0 0.0
  %208 = vmatmul.mubr.f32.gmra.mrb[0].mxu0 %v102
  %v209 = vpop.f32.mrb[0].mxu0
  %v210 = vadd.f32 %v65, %v209
  %v211 = vpop.f32.mrb[0].mxu0
  %v212 = vadd.f32 %v65, %v211
  %213 = vmatprep.mubr.f32.mxu0 0.0
  %214 = vmatmul.mubr.f32.gmra.mrb[0].mxu0 %v105
  %v215 = vpop.f32.mrb[0].mxu0
  %v216 = vadd.f32 %v70, %v215
  %v217 = vpop.f32.mrb[0].mxu0
  %v218 = vadd.f32 %v70, %v217
  %219 = vmatprep.mubr.f32.mxu0 0.0
  %220 = vmatmul.mubr.f32.gmra.mrb[0].mxu0 %v108
  %v221 = vpop.f32.mrb[0].mxu0
  %v222 = vadd.f32 %v75, %v221
  %v223 = vpop.f32.mrb[0].mxu0
  %v224 = vadd.f32 %v75, %v223
  %225 = vmatprep.mubr.f32.mxu0 0.0
  %226 = vmatmul.mubr.f32.gmra.mrb[0].mxu0 %v111
  %v227 = vpop.f32.mrb[0].mxu0
  %v228 = vadd.f32 %v80, %v227
  %v229 = vpop.f32.mrb[0].mxu0
  %v230 = vadd.f32 %v80, %v229
  %231 = vmatprep.mubr.f32.mxu0 0.0
  %232 = vmatmul.mubr.f32.gmra.mrb[0].mxu0 %v114
  %v233 = vpop.f32.mrb[0].mxu0
  %v234 = vadd.f32 %v85, %v233
  %v235 = vpop.f32.mrb[0].mxu0
  %v236 = vadd.f32 %v85, %v235
  %237 = vdwg.mxu0
  %238 = vmatprep.subr.mxu0 %v123
  %239 = vmatpush1.msra.mxu0 %v121
  %240 = vmatprep.subr.mxu0 0.0
  %241 = vmatpush1.msra.mxu0 0.0
  %242 = vmatprep.subr.mxu0 0.0
  %243 = vmatpush1.msra.mxu0 0.0
  %244 = vmatprep.subr.mxu0 0.0
  %245 = vmatpush1.msra.mxu0 0.0
  %246 = vmatprep.subr.mxu0 0.0
  %247 = vmatpush1.msra.mxu0 0.0
  %248 = vmatprep.subr.mxu0 0.0
  %249 = vmatpush1.msra.mxu0 0.0
  %250 = vmatprep.subr.mxu0 0.0
  %251 = vmatpush1.msra.mxu0 0.0
  %252 = vmatprep.subr.mxu0 0.0
  %253 = vmatpush1.msra.mxu0 0.0
  %254 = vmatprep.subr.mxu0 0.0
  %255 = vmatpush1.msra.mxu0 0.0
  %256 = vmatprep.subr.mxu0 0.0
  %257 = vmatpush1.msra.mxu0 0.0
  %258 = vmatprep.subr.mxu0 0.0
  %259 = vmatpush1.msra.mxu0 0.0
  %260 = vmatprep.subr.mxu0 0.0
  %261 = vmatpush1.msra.mxu0 0.0
  %262 = vmatprep.subr.mxu0 0.0
  %263 = vmatpush1.msra.mxu0 0.0
  %264 = vmatprep.subr.mxu0 0.0
  %265 = vmatpush1.msra.mxu0 0.0
  %266 = vmatprep.subr.mxu0 0.0
  %267 = vmatpush1.msra.mxu0 0.0
  %268 = vmatprep.subr.mxu0 0.0
  %269 = vmatpush1.msra.mxu0 0.0
  %270 = vmatprep.subr.mxu0 0.0
  %271 = vmatpush1.msra.mxu0 0.0
  %272 = vmatprep.subr.mxu0 0.0
  %273 = vmatpush1.msra.mxu0 0.0
  %274 = vmatprep.subr.mxu0 0.0
  %275 = vmatpush1.msra.mxu0 0.0
  %276 = vmatprep.subr.mxu0 0.0
  %277 = vmatpush1.msra.mxu0 0.0
  %278 = vmatprep.subr.mxu0 0.0
  %279 = vmatpush1.msra.mxu0 0.0
  %280 = vmatprep.subr.mxu0 0.0
  %281 = vmatpush1.msra.mxu0 0.0
  %282 = vmatprep.subr.mxu0 0.0
  %283 = vmatpush1.msra.mxu0 0.0
  %284 = vmatprep.subr.mxu0 0.0
  %285 = vmatpush1.msra.mxu0 0.0
  %286 = vmatprep.subr.mxu0 0.0
  %287 = vmatpush1.msra.mxu0 0.0
  %288 = vmatprep.subr.mxu0 0.0
  %289 = vmatpush1.msra.mxu0 0.0
  %290 = vmatprep.subr.mxu0 0.0
  %291 = vmatpush1.msra.mxu0 0.0
  %292 = vmatprep.subr.mxu0 0.0
  %293 = vmatpush1.msra.mxu0 0.0
  %294 = vmatprep.subr.mxu0 0.0
  %295 = vmatpush1.msra.mxu0 0.0
  %296 = vmatprep.subr.mxu0 0.0
  %297 = vmatpush1.msra.mxu0 0.0
  %298 = vmatprep.subr.mxu0 0.0
  %299 = vmatpush1.msra.mxu0 0.0
  %300 = vmatprep.subr.mxu0 0.0
  %301 = vmatpush1.msra.mxu0 0.0
  %302 = vmatprep.mubr.f32.mxu0 0.0
  %303 = vmatmul.mubr.f32.gmra.mrb[0].mxu0 %v93
  %v304 = vpop.f32.mrb[0].mxu0
  %v305 = vadd.f32 %v50, %v304
  %v306 = vpop.f32.mrb[0].mxu0
  %v307 = vadd.f32 %v50, %v306
  %308 = vmatprep.mubr.f32.mxu0 0.0
  %309 = vmatmul.mubr.f32.gmra.mrb[0].mxu0 %v96
  %v310 = vpop.f32.mrb[0].mxu0
  %v311 = vadd.f32 %v55, %v310
  %v312 = vpop.f32.mrb[0].mxu0
  %v313 = vadd.f32 %v55, %v312
  %314 = vmatprep.mubr.f32.mxu0 0.0
  %315 = vmatmul.mubr.f32.gmra.mrb[0].mxu0 %v99
  %v316 = vpop.f32.mrb[0].mxu0
  %v317 = vadd.f32 %v60, %v316
  %v318 = vpop.f32.mrb[0].mxu0
  %v319 = vadd.f32 %v60, %v318
  %320 = vmatprep.mubr.f32.mxu0 0.0
  %321 = vmatmul.mubr.f32.gmra.mrb[0].mxu0 %v102
  %v322 = vpop.f32.mrb[0].mxu0
  %v323 = vadd.f32 %v65, %v322
  %v324 = vpop.f32.mrb[0].mxu0
  %v325 = vadd.f32 %v65, %v324
  %326 = vmatprep.mubr.f32.mxu0 0.0
  %327 = vmatmul.mubr.f32.gmra.mrb[0].mxu0 %v105
  %v328 = vpop.f32.mrb[0].mxu0
  %v329 = vadd.f32 %v70, %v328
  %v330 = vpop.f32.mrb[0].mxu0
  %v331 = vadd.f32 %v70, %v330
  %332 = vmatprep.mubr.f32.mxu0 0.0
  %333 = vmatmul.mubr.f32.gmra.mrb[0].mxu0 %v108
  %v334 = vpop.f32.mrb[0].mxu0
  %v335 = vadd.f32 %v75, %v334
  %v336 = vpop.f32.mrb[0].mxu0
  %v337 = vadd.f32 %v75, %v336
  %338 = vmatprep.mubr.f32.mxu0 0.0
  %339 = vmatmul.mubr.f32.gmra.mrb[0].mxu0 %v111
  %v340 = vpop.f32.mrb[0].mxu0
  %v341 = vadd.f32 %v80, %v340
  %v342 = vpop.f32.mrb[0].mxu0
  %v343 = vadd.f32 %v80, %v342
  %344 = vmatprep.mubr.f32.mxu0 0.0
  %345 = vmatmul.mubr.f32.gmra.mrb[0].mxu0 %v114
  %v346 = vpop.f32.mrb[0].mxu0
  %v347 = vadd.f32 %v85, %v346
  %v348 = vpop.f32.mrb[0].mxu0
  %v349 = vadd.f32 %v85, %v348
  %350 = vdwg.mxu0
  %v351 = vadd.f32 %v192, %v194
  %v352 = vadd.f32 %v351, %v305
  %v353 = vadd.f32 %v352, %v307
  %354 = vadd.xlane.f32.xlu0 %v353
  %v355 = vpop.xlane.xlu0 %354
  %v356 = vadd.f32 %v198, %v200
  %v357 = vadd.f32 %v356, %v311
  %v358 = vadd.f32 %v357, %v313
  %359 = vadd.xlane.f32.xlu0 %v358
  %v360 = vpop.xlane.xlu0 %359
  %v361 = vadd.f32 %v204, %v206
  %v362 = vadd.f32 %v361, %v317
  %v363 = vadd.f32 %v362, %v319
  %364 = vadd.xlane.f32.xlu0 %v363
  %v365 = vpop.xlane.xlu0 %364
  %v366 = vadd.f32 %v210, %v212
  %v367 = vadd.f32 %v366, %v323
  %v368 = vadd.f32 %v367, %v325
  %369 = vadd.xlane.f32.xlu0 %v368
  %v370 = vpop.xlane.xlu0 %369
  %v371 = vadd.f32 %v216, %v218
  %v372 = vadd.f32 %v371, %v329
  %v373 = vadd.f32 %v372, %v331
  %374 = vadd.xlane.f32.xlu0 %v373
  %v375 = vpop.xlane.xlu0 %374
  %v376 = vadd.f32 %v222, %v224
  %v377 = vadd.f32 %v376, %v335
  %v378 = vadd.f32 %v377, %v337
  %379 = vadd.xlane.f32.xlu0 %v378
  %v380 = vpop.xlane.xlu0 %379
  %v381 = vadd.f32 %v228, %v230
  %v382 = vadd.f32 %v381, %v341
  %v383 = vadd.f32 %v382, %v343
  %384 = vadd.xlane.f32.xlu0 %v383
  %v385 = vpop.xlane.xlu0 %384
  %v386 = vadd.f32 %v234, %v236
  %v387 = vadd.f32 %v386, %v347
  %v388 = vadd.f32 %v387, %v349
  %389 = vadd.xlane.f32.xlu0 %v388
  %v390 = vpop.xlane.xlu0 %389
  %v391 = vrcp.pop 512.0
  %v392 = vmul.f32 %v355, %v391
  %v393 = vmul.f32 %v360, %v391
  %v394 = vmul.f32 %v365, %v391
  %v395 = vmul.f32 %v370, %v391
  %v396 = vmul.f32 %v375, %v391
  %v397 = vmul.f32 %v380, %v391
  %v398 = vmul.f32 %v385, %v391
  %v399 = vmul.f32 %v390, %v391
  %v400 = vmul.f32 %v192, %v192
  %v401 = vmul.f32 %v194, %v194
  %v402 = vmul.f32 %v305, %v305
  %v403 = vmul.f32 %v307, %v307
  %v404 = vmul.f32 %v198, %v198
  %v405 = vmul.f32 %v200, %v200
  %v406 = vmul.f32 %v311, %v311
  %v407 = vmul.f32 %v313, %v313
  %v408 = vmul.f32 %v204, %v204
  %v409 = vmul.f32 %v206, %v206
  %v410 = vmul.f32 %v317, %v317
  %v411 = vmul.f32 %v319, %v319
  %v412 = vmul.f32 %v210, %v210
  %v413 = vmul.f32 %v212, %v212
  %v414 = vmul.f32 %v323, %v323
  %v415 = vmul.f32 %v325, %v325
  %v416 = vmul.f32 %v216, %v216
  %v417 = vmul.f32 %v218, %v218
  %v418 = vmul.f32 %v329, %v329
  %v419 = vmul.f32 %v331, %v331
  %v420 = vmul.f32 %v222, %v222
  %v421 = vmul.f32 %v224, %v224
  %v422 = vmul.f32 %v335, %v335
  %v423 = vmul.f32 %v337, %v337
  %v424 = vmul.f32 %v228, %v228
  %v425 = vmul.f32 %v230, %v230
  %v426 = vmul.f32 %v341, %v341
  %v427 = vmul.f32 %v343, %v343
  %v428 = vmul.f32 %v234, %v234
  %v429 = vmul.f32 %v236, %v236
  %v430 = vmul.f32 %v347, %v347
  %v431 = vmul.f32 %v349, %v349
  %v432 = vadd.f32 %v400, %v401
  %v433 = vadd.f32 %v432, %v402
  %v434 = vadd.f32 %v433, %v403
  %435 = vadd.xlane.f32.xlu0 %v434
  %v436 = vpop.xlane.xlu0 %435
  %v437 = vadd.f32 %v404, %v405
  %v438 = vadd.f32 %v437, %v406
  %v439 = vadd.f32 %v438, %v407
  %440 = vadd.xlane.f32.xlu0 %v439
  %v441 = vpop.xlane.xlu0 %440
  %v442 = vadd.f32 %v408, %v409
  %v443 = vadd.f32 %v442, %v410
  %v444 = vadd.f32 %v443, %v411
  %445 = vadd.xlane.f32.xlu0 %v444
  %v446 = vpop.xlane.xlu0 %445
  %v447 = vadd.f32 %v412, %v413
  %v448 = vadd.f32 %v447, %v414
  %v449 = vadd.f32 %v448, %v415
  %450 = vadd.xlane.f32.xlu0 %v449
  %v451 = vpop.xlane.xlu0 %450
  %v452 = vadd.f32 %v416, %v417
  %v453 = vadd.f32 %v452, %v418
  %v454 = vadd.f32 %v453, %v419
  %455 = vadd.xlane.f32.xlu0 %v454
  %v456 = vpop.xlane.xlu0 %455
  %v457 = vadd.f32 %v420, %v421
  %v458 = vadd.f32 %v457, %v422
  %v459 = vadd.f32 %v458, %v423
  %460 = vadd.xlane.f32.xlu0 %v459
  %v461 = vpop.xlane.xlu0 %460
  %v462 = vadd.f32 %v424, %v425
  %v463 = vadd.f32 %v462, %v426
  %v464 = vadd.f32 %v463, %v427
  %465 = vadd.xlane.f32.xlu0 %v464
  %v466 = vpop.xlane.xlu0 %465
  %v467 = vadd.f32 %v428, %v429
  %v468 = vadd.f32 %v467, %v430
  %v469 = vadd.f32 %v468, %v431
  %470 = vadd.xlane.f32.xlu0 %v469
  %v471 = vpop.xlane.xlu0 %470
  %v472 = vmul.f32 %v436, %v391
  %v473 = vmul.f32 %v441, %v391
  %v474 = vmul.f32 %v446, %v391
  %v475 = vmul.f32 %v451, %v391
  %v476 = vmul.f32 %v456, %v391
  %v477 = vmul.f32 %v461, %v391
  %v478 = vmul.f32 %v466, %v391
  %v479 = vmul.f32 %v471, %v391
  %v480 = vmul.f32 %v392, %v392
  %v481 = vmul.f32 %v393, %v393
  %v482 = vmul.f32 %v394, %v394
  %v483 = vmul.f32 %v395, %v395
  %v484 = vmul.f32 %v396, %v396
  %v485 = vmul.f32 %v397, %v397
  %v486 = vmul.f32 %v398, %v398
  %v487 = vmul.f32 %v399, %v399
  %v488 = vsub.f32 %v472, %v480
  %v489 = vsub.f32 %v473, %v481
  %v490 = vsub.f32 %v474, %v482
  %v491 = vsub.f32 %v475, %v483
  %v492 = vsub.f32 %v476, %v484
  %v493 = vsub.f32 %v477, %v485
  %v494 = vsub.f32 %v478, %v486
  %v495 = vsub.f32 %v479, %v487
  %v496 = vsub.f32 %v192, %v392
  %v497 = vsub.f32 %v194, %v392
  %v498 = vsub.f32 %v305, %v392
  %v499 = vsub.f32 %v307, %v392
  %v500 = vsub.f32 %v198, %v393
  %v501 = vsub.f32 %v200, %v393
  %v502 = vsub.f32 %v311, %v393
  %v503 = vsub.f32 %v313, %v393
  %v504 = vsub.f32 %v204, %v394
  %v505 = vsub.f32 %v206, %v394
  %v506 = vsub.f32 %v317, %v394
  %v507 = vsub.f32 %v319, %v394
  %v508 = vsub.f32 %v210, %v395
  %v509 = vsub.f32 %v212, %v395
  %v510 = vsub.f32 %v323, %v395
  %v511 = vsub.f32 %v325, %v395
  %v512 = vsub.f32 %v216, %v396
  %v513 = vsub.f32 %v218, %v396
  %v514 = vsub.f32 %v329, %v396
  %v515 = vsub.f32 %v331, %v396
  %v516 = vsub.f32 %v222, %v397
  %v517 = vsub.f32 %v224, %v397
  %v518 = vsub.f32 %v335, %v397
  %v519 = vsub.f32 %v337, %v397
  %v520 = vsub.f32 %v228, %v398
  %v521 = vsub.f32 %v230, %v398
  %v522 = vsub.f32 %v341, %v398
  %v523 = vsub.f32 %v343, %v398
  %v524 = vsub.f32 %v234, %v399
  %v525 = vsub.f32 %v236, %v399
  %v526 = vsub.f32 %v347, %v399
  %v527 = vsub.f32 %v349, %v399
  %v528 = vadd.f32 %v488, 1e-05
  %v529 = vadd.f32 %v489, 1e-05
  %v530 = vadd.f32 %v490, 1e-05
  %v531 = vadd.f32 %v491, 1e-05
  %v532 = vadd.f32 %v492, 1e-05
  %v533 = vadd.f32 %v493, 1e-05
  %v534 = vadd.f32 %v494, 1e-05
  %v535 = vadd.f32 %v495, 1e-05
  %v536 = vrsqrt.pop %v528
  %v537 = vrsqrt.pop %v529
  %v538 = vrsqrt.pop %v530
  %v539 = vrsqrt.pop %v531
  %v540 = vrsqrt.pop %v532
  %v541 = vrsqrt.pop %v533
  %v542 = vrsqrt.pop %v534
  %v543 = vrsqrt.pop %v535
  %v544 = vmul.f32 %v496, %v536
  %v545 = vmul.f32 %v497, %v536
  %v546 = vmul.f32 %v498, %v536
  %v547 = vmul.f32 %v499, %v536
  %v548 = vmul.f32 %v500, %v537
  %v549 = vmul.f32 %v501, %v537
  %v550 = vmul.f32 %v502, %v537
  %v551 = vmul.f32 %v503, %v537
  %v552 = vmul.f32 %v504, %v538
  %v553 = vmul.f32 %v505, %v538
  %v554 = vmul.f32 %v506, %v538
  %v555 = vmul.f32 %v507, %v538
  %v556 = vmul.f32 %v508, %v539
  %v557 = vmul.f32 %v509, %v539
  %v558 = vmul.f32 %v510, %v539
  %v559 = vmul.f32 %v511, %v539
  %v560 = vmul.f32 %v512, %v540
  %v561 = vmul.f32 %v513, %v540
  %v562 = vmul.f32 %v514, %v540
  %v563 = vmul.f32 %v515, %v540
  %v564 = vmul.f32 %v516, %v541
  %v565 = vmul.f32 %v517, %v541
  %v566 = vmul.f32 %v518, %v541
  %v567 = vmul.f32 %v519, %v541
  %v568 = vmul.f32 %v520, %v542
  %v569 = vmul.f32 %v521, %v542
  %v570 = vmul.f32 %v522, %v542
  %v571 = vmul.f32 %v523, %v542
  %v572 = vmul.f32 %v524, %v543
  %v573 = vmul.f32 %v525, %v543
  %v574 = vmul.f32 %v526, %v543
  %v575 = vmul.f32 %v527, %v543
  %v576 = vld [vmem:[%s3] sm:$0xff]
  %v577 = vld [vmem:[%s3 + $0x8] sm:$0xff]
  %v578 = vld [vmem:[%s3 + $0x10] sm:$0xff]
  %v579 = vld [vmem:[%s3 + $0x18] sm:$0xff]
  %v580 = vld [vmem:[%s3 + $0x20] sm:$0xff]
  %v581 = vld [vmem:[%s3 + $0x28] sm:$0xff]
  %v582 = vld [vmem:[%s3 + $0x30] sm:$0xff]
  %v583 = vld [vmem:[%s3 + $0x38] sm:$0xff]
  %585 = vset.pattern.permute.xlu0 0
  %586 = vperm.xlu0 %585, %v576
  %v587 = vpop.permute.xlu0 %586
  %590 = vset.pattern.permute.xlu0 0
  %591 = vperm.xlu0 %590, %v577
  %v592 = vpop.permute.xlu0 %591
  %595 = vset.pattern.permute.xlu0 0
  %596 = vperm.xlu0 %595, %v578
  %v597 = vpop.permute.xlu0 %596
  %600 = vset.pattern.permute.xlu0 0
  %601 = vperm.xlu0 %600, %v579
  %v602 = vpop.permute.xlu0 %601
  %605 = vset.pattern.permute.xlu0 0
  %606 = vperm.xlu0 %605, %v580
  %v607 = vpop.permute.xlu0 %606
  %610 = vset.pattern.permute.xlu0 0
  %611 = vperm.xlu0 %610, %v581
  %v612 = vpop.permute.xlu0 %611
  %615 = vset.pattern.permute.xlu0 0
  %616 = vperm.xlu0 %615, %v582
  %v617 = vpop.permute.xlu0 %616
  %620 = vset.pattern.permute.xlu0 0
  %621 = vperm.xlu0 %620, %v583
  %v622 = vpop.permute.xlu0 %621
  %v624 = vmul.f32 %v544, %v587
  %v625 = vmul.f32 %v545, %v587
  %v626 = vmul.f32 %v546, %v587
  %v627 = vmul.f32 %v547, %v587
  %v628 = vmul.f32 %v548, %v592
  %v629 = vmul.f32 %v549, %v592
  %v630 = vmul.f32 %v550, %v592
  %v631 = vmul.f32 %v551, %v592
  %v632 = vmul.f32 %v552, %v597
  %v633 = vmul.f32 %v553, %v597
  %v634 = vmul.f32 %v554, %v597
  %v635 = vmul.f32 %v555, %v597
  %v636 = vmul.f32 %v556, %v602
  %v637 = vmul.f32 %v557, %v602
  %v638 = vmul.f32 %v558, %v602
  %v639 = vmul.f32 %v559, %v602
  %v640 = vmul.f32 %v560, %v607
  %v641 = vmul.f32 %v561, %v607
  %v642 = vmul.f32 %v562, %v607
  %v643 = vmul.f32 %v563, %v607
  %v644 = vmul.f32 %v564, %v612
  %v645 = vmul.f32 %v565, %v612
  %v646 = vmul.f32 %v566, %v612
  %v647 = vmul.f32 %v567, %v612
  %v648 = vmul.f32 %v568, %v617
  %v649 = vmul.f32 %v569, %v617
  %v650 = vmul.f32 %v570, %v617
  %v651 = vmul.f32 %v571, %v617
  %v652 = vmul.f32 %v572, %v622
  %v653 = vmul.f32 %v573, %v622
  %v654 = vmul.f32 %v574, %v622
  %v655 = vmul.f32 %v575, %v622
  %v656 = vld [vmem:[%s4] sm:$0xff]
  %v657 = vld [vmem:[%s4 + $0x8] sm:$0xff]
  %v658 = vld [vmem:[%s4 + $0x10] sm:$0xff]
  %v659 = vld [vmem:[%s4 + $0x18] sm:$0xff]
  %v660 = vld [vmem:[%s4 + $0x20] sm:$0xff]
  %v661 = vld [vmem:[%s4 + $0x28] sm:$0xff]
  %v662 = vld [vmem:[%s4 + $0x30] sm:$0xff]
  %v663 = vld [vmem:[%s4 + $0x38] sm:$0xff]
  %665 = vset.pattern.permute.xlu0 0
  %666 = vperm.xlu0 %665, %v656
  %v667 = vpop.permute.xlu0 %666
  %670 = vset.pattern.permute.xlu0 0
  %671 = vperm.xlu0 %670, %v657
  %v672 = vpop.permute.xlu0 %671
  %675 = vset.pattern.permute.xlu0 0
  %676 = vperm.xlu0 %675, %v658
  %v677 = vpop.permute.xlu0 %676
  %680 = vset.pattern.permute.xlu0 0
  %681 = vperm.xlu0 %680, %v659
  %v682 = vpop.permute.xlu0 %681
  %685 = vset.pattern.permute.xlu0 0
  %686 = vperm.xlu0 %685, %v660
  %v687 = vpop.permute.xlu0 %686
  %690 = vset.pattern.permute.xlu0 0
  %691 = vperm.xlu0 %690, %v661
  %v692 = vpop.permute.xlu0 %691
  %695 = vset.pattern.permute.xlu0 0
  %696 = vperm.xlu0 %695, %v662
  %v697 = vpop.permute.xlu0 %696
  %700 = vset.pattern.permute.xlu0 0
  %701 = vperm.xlu0 %700, %v663
  %v702 = vpop.permute.xlu0 %701
  %v704 = vadd.f32 %v624, %v667
  %v705 = vadd.f32 %v625, %v667
  %v706 = vadd.f32 %v626, %v667
  %v707 = vadd.f32 %v627, %v667
  %v708 = vadd.f32 %v628, %v672
  %v709 = vadd.f32 %v629, %v672
  %v710 = vadd.f32 %v630, %v672
  %v711 = vadd.f32 %v631, %v672
  %v712 = vadd.f32 %v632, %v677
  %v713 = vadd.f32 %v633, %v677
  %v714 = vadd.f32 %v634, %v677
  %v715 = vadd.f32 %v635, %v677
  %v716 = vadd.f32 %v636, %v682
  %v717 = vadd.f32 %v637, %v682
  %v718 = vadd.f32 %v638, %v682
  %v719 = vadd.f32 %v639, %v682
  %v720 = vadd.f32 %v640, %v687
  %v721 = vadd.f32 %v641, %v687
  %v722 = vadd.f32 %v642, %v687
  %v723 = vadd.f32 %v643, %v687
  %v724 = vadd.f32 %v644, %v692
  %v725 = vadd.f32 %v645, %v692
  %v726 = vadd.f32 %v646, %v692
  %v727 = vadd.f32 %v647, %v692
  %v728 = vadd.f32 %v648, %v697
  %v729 = vadd.f32 %v649, %v697
  %v730 = vadd.f32 %v650, %v697
  %v731 = vadd.f32 %v651, %v697
  %v732 = vadd.f32 %v652, %v702
  %v733 = vadd.f32 %v653, %v702
  %v734 = vadd.f32 %v654, %v702
  %v735 = vadd.f32 %v655, %v702
  %v736 = vmax.f32 %v704, 0.0
  %v737 = vmax.f32 %v705, 0.0
  %v738 = vmax.f32 %v706, 0.0
  %v739 = vmax.f32 %v707, 0.0
  %v740 = vmax.f32 %v708, 0.0
  %v741 = vmax.f32 %v709, 0.0
  %v742 = vmax.f32 %v710, 0.0
  %v743 = vmax.f32 %v711, 0.0
  %v744 = vmax.f32 %v712, 0.0
  %v745 = vmax.f32 %v713, 0.0
  %v746 = vmax.f32 %v714, 0.0
  %v747 = vmax.f32 %v715, 0.0
  %v748 = vmax.f32 %v716, 0.0
  %v749 = vmax.f32 %v717, 0.0
  %v750 = vmax.f32 %v718, 0.0
  %v751 = vmax.f32 %v719, 0.0
  %v752 = vmax.f32 %v720, 0.0
  %v753 = vmax.f32 %v721, 0.0
  %v754 = vmax.f32 %v722, 0.0
  %v755 = vmax.f32 %v723, 0.0
  %v756 = vmax.f32 %v724, 0.0
  %v757 = vmax.f32 %v725, 0.0
  %v758 = vmax.f32 %v726, 0.0
  %v759 = vmax.f32 %v727, 0.0
  %v760 = vmax.f32 %v728, 0.0
  %v761 = vmax.f32 %v729, 0.0
  %v762 = vmax.f32 %v730, 0.0
  %v763 = vmax.f32 %v731, 0.0
  %v764 = vmax.f32 %v732, 0.0
  %v765 = vmax.f32 %v733, 0.0
  %v766 = vmax.f32 %v734, 0.0
  %v767 = vmax.f32 %v735, 0.0
  %v768 = vld [vmem:[%s5] sm:$0xff]
  %v769 = vld [vmem:[%s5 + $0x8] sm:$0xff]
  %v770 = vld [vmem:[%s5 + $0x10] sm:$0xff]
  %v771 = vld [vmem:[%s5 + $0x18] sm:$0xff]
  %v772 = vld [vmem:[%s5 + $0x20] sm:$0xff]
  %v773 = vld [vmem:[%s5 + $0x28] sm:$0xff]
  %v774 = vld [vmem:[%s5 + $0x30] sm:$0xff]
  %v775 = vld [vmem:[%s5 + $0x38] sm:$0xff]
  %v776 = vld [vmem:[%s5 + $0x40] sm:$0xff]
  %v777 = vld [vmem:[%s5 + $0x48] sm:$0xff]
  %v778 = vld [vmem:[%s5 + $0x50] sm:$0xff]
  %v779 = vld [vmem:[%s5 + $0x58] sm:$0xff]
  %v780 = vld [vmem:[%s5 + $0x60] sm:$0xff]
  %v781 = vld [vmem:[%s5 + $0x68] sm:$0xff]
  %v782 = vld [vmem:[%s5 + $0x70] sm:$0xff]
  %v783 = vld [vmem:[%s5 + $0x78] sm:$0xff]
  %v784 = vld [vmem:[%s5 + $0x80] sm:$0xff]
  %v785 = vld [vmem:[%s5 + $0x88] sm:$0xff]
  %v786 = vld [vmem:[%s5 + $0x90] sm:$0xff]
  %v787 = vld [vmem:[%s5 + $0x98] sm:$0xff]
  %v788 = vld [vmem:[%s5 + $0xa0] sm:$0xff]
  %v789 = vld [vmem:[%s5 + $0xa8] sm:$0xff]
  %v790 = vld [vmem:[%s5 + $0xb0] sm:$0xff]
  %v791 = vld [vmem:[%s5 + $0xb8] sm:$0xff]
  %v792 = vld [vmem:[%s5 + $0xc0] sm:$0xff]
  %v793 = vld [vmem:[%s5 + $0xc8] sm:$0xff]
  %v794 = vld [vmem:[%s5 + $0xd0] sm:$0xff]
  %v795 = vld [vmem:[%s5 + $0xd8] sm:$0xff]
  %v796 = vld [vmem:[%s5 + $0xe0] sm:$0xff]
  %v797 = vld [vmem:[%s5 + $0xe8] sm:$0xff]
  %v798 = vld [vmem:[%s5 + $0xf0] sm:$0xff]
  %v799 = vld [vmem:[%s5 + $0xf8] sm:$0xff]
  %v800 = vld [vmem:[%s5 + $0x100] sm:$0xff]
  %v801 = vld [vmem:[%s5 + $0x108] sm:$0xff]
  %v802 = vld [vmem:[%s5 + $0x110] sm:$0xff]
  %v803 = vld [vmem:[%s5 + $0x118] sm:$0xff]
  %v804 = vld [vmem:[%s5 + $0x120] sm:$0xff]
  %v805 = vld [vmem:[%s5 + $0x128] sm:$0xff]
  %v806 = vld [vmem:[%s5 + $0x130] sm:$0xff]
  %v807 = vld [vmem:[%s5 + $0x138] sm:$0xff]
  %v808 = vld [vmem:[%s5 + $0x140] sm:$0xff]
  %v809 = vld [vmem:[%s5 + $0x148] sm:$0xff]
  %v810 = vld [vmem:[%s5 + $0x150] sm:$0xff]
  %v811 = vld [vmem:[%s5 + $0x158] sm:$0xff]
  %v812 = vld [vmem:[%s5 + $0x160] sm:$0xff]
  %v813 = vld [vmem:[%s5 + $0x168] sm:$0xff]
  %v814 = vld [vmem:[%s5 + $0x170] sm:$0xff]
  %v815 = vld [vmem:[%s5 + $0x178] sm:$0xff]
  %v816 = vld [vmem:[%s5 + $0x180] sm:$0xff]
  %v817 = vld [vmem:[%s5 + $0x188] sm:$0xff]
  %v818 = vld [vmem:[%s5 + $0x190] sm:$0xff]
  %v819 = vld [vmem:[%s5 + $0x198] sm:$0xff]
  %v820 = vld [vmem:[%s5 + $0x1a0] sm:$0xff]
  %v821 = vld [vmem:[%s5 + $0x1a8] sm:$0xff]
  %v822 = vld [vmem:[%s5 + $0x1b0] sm:$0xff]
  %v823 = vld [vmem:[%s5 + $0x1b8] sm:$0xff]
  %v824 = vld [vmem:[%s5 + $0x1c0] sm:$0xff]
  %v825 = vld [vmem:[%s5 + $0x1c8] sm:$0xff]
  %v826 = vld [vmem:[%s5 + $0x1d0] sm:$0xff]
  %v827 = vld [vmem:[%s5 + $0x1d8] sm:$0xff]
  %v828 = vld [vmem:[%s5 + $0x1e0] sm:$0xff]
  %v829 = vld [vmem:[%s5 + $0x1e8] sm:$0xff]
  %v830 = vld [vmem:[%s5 + $0x1f0] sm:$0xff]
  %v831 = vld [vmem:[%s5 + $0x1f8] sm:$0xff]
  %832 = vmatprep.subr.mxu0 0.0
  %833 = vmatpush1.msra.mxu0 %v768
  %834 = vmatprep.subr.mxu0 0.0
  %835 = vmatpush1.msra.mxu0 %v769
  %836 = vmatprep.subr.mxu0 0.0
  %837 = vmatpush1.msra.mxu0 %v770
  %838 = vmatprep.subr.mxu0 0.0
  %839 = vmatpush1.msra.mxu0 %v771
  %840 = vmatprep.subr.mxu0 0.0
  %841 = vmatpush1.msra.mxu0 %v772
  %842 = vmatprep.subr.mxu0 0.0
  %843 = vmatpush1.msra.mxu0 %v773
  %844 = vmatprep.subr.mxu0 0.0
  %845 = vmatpush1.msra.mxu0 %v774
  %846 = vmatprep.subr.mxu0 0.0
  %847 = vmatpush1.msra.mxu0 %v775
  %848 = vmatprep.subr.mxu0 0.0
  %849 = vmatpush1.msra.mxu0 %v776
  %850 = vmatprep.subr.mxu0 0.0
  %851 = vmatpush1.msra.mxu0 %v777
  %852 = vmatprep.subr.mxu0 0.0
  %853 = vmatpush1.msra.mxu0 %v778
  %854 = vmatprep.subr.mxu0 0.0
  %855 = vmatpush1.msra.mxu0 %v779
  %856 = vmatprep.subr.mxu0 0.0
  %857 = vmatpush1.msra.mxu0 %v780
  %858 = vmatprep.subr.mxu0 0.0
  %859 = vmatpush1.msra.mxu0 %v781
  %860 = vmatprep.subr.mxu0 0.0
  %861 = vmatpush1.msra.mxu0 %v782
  %862 = vmatprep.subr.mxu0 0.0
  %863 = vmatpush1.msra.mxu0 %v783
  %864 = vmatprep.subr.mxu0 0.0
  %865 = vmatpush1.msra.mxu0 %v784
  %866 = vmatprep.subr.mxu0 0.0
  %867 = vmatpush1.msra.mxu0 %v785
  %868 = vmatprep.subr.mxu0 0.0
  %869 = vmatpush1.msra.mxu0 %v786
  %870 = vmatprep.subr.mxu0 0.0
  %871 = vmatpush1.msra.mxu0 %v787
  %872 = vmatprep.subr.mxu0 0.0
  %873 = vmatpush1.msra.mxu0 %v788
  %874 = vmatprep.subr.mxu0 0.0
  %875 = vmatpush1.msra.mxu0 %v789
  %876 = vmatprep.subr.mxu0 0.0
  %877 = vmatpush1.msra.mxu0 %v790
  %878 = vmatprep.subr.mxu0 0.0
  %879 = vmatpush1.msra.mxu0 %v791
  %880 = vmatprep.subr.mxu0 0.0
  %881 = vmatpush1.msra.mxu0 %v792
  %882 = vmatprep.subr.mxu0 0.0
  %883 = vmatpush1.msra.mxu0 %v793
  %884 = vmatprep.subr.mxu0 0.0
  %885 = vmatpush1.msra.mxu0 %v794
  %886 = vmatprep.subr.mxu0 0.0
  %887 = vmatpush1.msra.mxu0 %v795
  %888 = vmatprep.subr.mxu0 0.0
  %889 = vmatpush1.msra.mxu0 %v796
  %890 = vmatprep.subr.mxu0 0.0
  %891 = vmatpush1.msra.mxu0 %v797
  %892 = vmatprep.subr.mxu0 0.0
  %893 = vmatpush1.msra.mxu0 %v798
  %894 = vmatprep.subr.mxu0 0.0
  %895 = vmatpush1.msra.mxu0 %v799
  %896 = vmatprep.mubr.f32.mxu0 %v737
  %897 = vmatmul.mubr.f32.gmra.mrb[0].mxu0 %v736
  %v898 = vpop.f32.mrb[0].mxu0
  %v899 = vadd.f32 0.0, %v898
  %v900 = vpop.f32.mrb[0].mxu0
  %901 = vmatprep.mubr.f32.mxu0 %v741
  %902 = vmatmul.mubr.f32.gmra.mrb[0].mxu0 %v740
  %v903 = vpop.f32.mrb[0].mxu0
  %v904 = vadd.f32 0.0, %v903
  %v905 = vpop.f32.mrb[0].mxu0
  %906 = vmatprep.mubr.f32.mxu0 %v745
  %907 = vmatmul.mubr.f32.gmra.mrb[0].mxu0 %v744
  %v908 = vpop.f32.mrb[0].mxu0
  %v909 = vadd.f32 0.0, %v908
  %v910 = vpop.f32.mrb[0].mxu0
  %911 = vmatprep.mubr.f32.mxu0 %v749
  %912 = vmatmul.mubr.f32.gmra.mrb[0].mxu0 %v748
  %v913 = vpop.f32.mrb[0].mxu0
  %v914 = vadd.f32 0.0, %v913
  %v915 = vpop.f32.mrb[0].mxu0
  %916 = vmatprep.mubr.f32.mxu0 %v753
  %917 = vmatmul.mubr.f32.gmra.mrb[0].mxu0 %v752
  %v918 = vpop.f32.mrb[0].mxu0
  %v919 = vadd.f32 0.0, %v918
  %v920 = vpop.f32.mrb[0].mxu0
  %921 = vmatprep.mubr.f32.mxu0 %v757
  %922 = vmatmul.mubr.f32.gmra.mrb[0].mxu0 %v756
  %v923 = vpop.f32.mrb[0].mxu0
  %v924 = vadd.f32 0.0, %v923
  %v925 = vpop.f32.mrb[0].mxu0
  %926 = vmatprep.mubr.f32.mxu0 %v761
  %927 = vmatmul.mubr.f32.gmra.mrb[0].mxu0 %v760
  %v928 = vpop.f32.mrb[0].mxu0
  %v929 = vadd.f32 0.0, %v928
  %v930 = vpop.f32.mrb[0].mxu0
  %931 = vmatprep.mubr.f32.mxu0 %v765
  %932 = vmatmul.mubr.f32.gmra.mrb[0].mxu0 %v764
  %v933 = vpop.f32.mrb[0].mxu0
  %v934 = vadd.f32 0.0, %v933
  %v935 = vpop.f32.mrb[0].mxu0
  %936 = vdwg.mxu0
  %937 = vmatprep.subr.mxu0 0.0
  %938 = vmatpush1.msra.mxu0 %v800
  %939 = vmatprep.subr.mxu0 0.0
  %940 = vmatpush1.msra.mxu0 %v801
  %941 = vmatprep.subr.mxu0 0.0
  %942 = vmatpush1.msra.mxu0 %v802
  %943 = vmatprep.subr.mxu0 0.0
  %944 = vmatpush1.msra.mxu0 %v803
  %945 = vmatprep.subr.mxu0 0.0
  %946 = vmatpush1.msra.mxu0 %v804
  %947 = vmatprep.subr.mxu0 0.0
  %948 = vmatpush1.msra.mxu0 %v805
  %949 = vmatprep.subr.mxu0 0.0
  %950 = vmatpush1.msra.mxu0 %v806
  %951 = vmatprep.subr.mxu0 0.0
  %952 = vmatpush1.msra.mxu0 %v807
  %953 = vmatprep.subr.mxu0 0.0
  %954 = vmatpush1.msra.mxu0 %v808
  %955 = vmatprep.subr.mxu0 0.0
  %956 = vmatpush1.msra.mxu0 %v809
  %957 = vmatprep.subr.mxu0 0.0
  %958 = vmatpush1.msra.mxu0 %v810
  %959 = vmatprep.subr.mxu0 0.0
  %960 = vmatpush1.msra.mxu0 %v811
  %961 = vmatprep.subr.mxu0 0.0
  %962 = vmatpush1.msra.mxu0 %v812
  %963 = vmatprep.subr.mxu0 0.0
  %964 = vmatpush1.msra.mxu0 %v813
  %965 = vmatprep.subr.mxu0 0.0
  %966 = vmatpush1.msra.mxu0 %v814
  %967 = vmatprep.subr.mxu0 0.0
  %968 = vmatpush1.msra.mxu0 %v815
  %969 = vmatprep.subr.mxu0 0.0
  %970 = vmatpush1.msra.mxu0 %v816
  %971 = vmatprep.subr.mxu0 0.0
  %972 = vmatpush1.msra.mxu0 %v817
  %973 = vmatprep.subr.mxu0 0.0
  %974 = vmatpush1.msra.mxu0 %v818
  %975 = vmatprep.subr.mxu0 0.0
  %976 = vmatpush1.msra.mxu0 %v819
  %977 = vmatprep.subr.mxu0 0.0
  %978 = vmatpush1.msra.mxu0 %v820
  %979 = vmatprep.subr.mxu0 0.0
  %980 = vmatpush1.msra.mxu0 %v821
  %981 = vmatprep.subr.mxu0 0.0
  %982 = vmatpush1.msra.mxu0 %v822
  %983 = vmatprep.subr.mxu0 0.0
  %984 = vmatpush1.msra.mxu0 %v823
  %985 = vmatprep.subr.mxu0 0.0
  %986 = vmatpush1.msra.mxu0 %v824
  %987 = vmatprep.subr.mxu0 0.0
  %988 = vmatpush1.msra.mxu0 %v825
  %989 = vmatprep.subr.mxu0 0.0
  %990 = vmatpush1.msra.mxu0 %v826
  %991 = vmatprep.subr.mxu0 0.0
  %992 = vmatpush1.msra.mxu0 %v827
  %993 = vmatprep.subr.mxu0 0.0
  %994 = vmatpush1.msra.mxu0 %v828
  %995 = vmatprep.subr.mxu0 0.0
  %996 = vmatpush1.msra.mxu0 %v829
  %997 = vmatprep.subr.mxu0 0.0
  %998 = vmatpush1.msra.mxu0 %v830
  %999 = vmatprep.subr.mxu0 0.0
  %1000 = vmatpush1.msra.mxu0 %v831
  %1001 = vmatprep.mubr.f32.mxu0 %v739
  %1002 = vmatmul.mubr.f32.gmra.mrb[0].mxu0 %v738
  %v1003 = vpop.f32.mrb[0].mxu0
  %v1004 = vadd.f32 %v899, %v1003
  %v1005 = vpop.f32.mrb[0].mxu0
  %1006 = vmatprep.mubr.f32.mxu0 %v743
  %1007 = vmatmul.mubr.f32.gmra.mrb[0].mxu0 %v742
  %v1008 = vpop.f32.mrb[0].mxu0
  %v1009 = vadd.f32 %v904, %v1008
  %v1010 = vpop.f32.mrb[0].mxu0
  %1011 = vmatprep.mubr.f32.mxu0 %v747
  %1012 = vmatmul.mubr.f32.gmra.mrb[0].mxu0 %v746
  %v1013 = vpop.f32.mrb[0].mxu0
  %v1014 = vadd.f32 %v909, %v1013
  %v1015 = vpop.f32.mrb[0].mxu0
  %1016 = vmatprep.mubr.f32.mxu0 %v751
  %1017 = vmatmul.mubr.f32.gmra.mrb[0].mxu0 %v750
  %v1018 = vpop.f32.mrb[0].mxu0
  %v1019 = vadd.f32 %v914, %v1018
  %v1020 = vpop.f32.mrb[0].mxu0
  %1021 = vmatprep.mubr.f32.mxu0 %v755
  %1022 = vmatmul.mubr.f32.gmra.mrb[0].mxu0 %v754
  %v1023 = vpop.f32.mrb[0].mxu0
  %v1024 = vadd.f32 %v919, %v1023
  %v1025 = vpop.f32.mrb[0].mxu0
  %1026 = vmatprep.mubr.f32.mxu0 %v759
  %1027 = vmatmul.mubr.f32.gmra.mrb[0].mxu0 %v758
  %v1028 = vpop.f32.mrb[0].mxu0
  %v1029 = vadd.f32 %v924, %v1028
  %v1030 = vpop.f32.mrb[0].mxu0
  %1031 = vmatprep.mubr.f32.mxu0 %v763
  %1032 = vmatmul.mubr.f32.gmra.mrb[0].mxu0 %v762
  %v1033 = vpop.f32.mrb[0].mxu0
  %v1034 = vadd.f32 %v929, %v1033
  %v1035 = vpop.f32.mrb[0].mxu0
  %1036 = vmatprep.mubr.f32.mxu0 %v767
  %1037 = vmatmul.mubr.f32.gmra.mrb[0].mxu0 %v766
  %v1038 = vpop.f32.mrb[0].mxu0
  %v1039 = vadd.f32 %v934, %v1038
  %v1040 = vpop.f32.mrb[0].mxu0
  %1041 = vdwg.mxu0
  %v1042 = vld [vmem:[%s6] sm:$0xff]
  %v1043 = vld [vmem:[%s6 + $0x8] sm:$0x3]
  %v1044 = vld [vmem:[%s7] sm:$0xff]
  %v1045 = vld [vmem:[%s7 + $0x8] sm:$0x3]
  %1047 = vset.pattern.permute.xlu0 0
  %1048 = vperm.xlu0 %1047, %v1044
  %v1049 = vpop.permute.xlu0 %1048
  %1052 = vset.pattern.permute.xlu0 0
  %1053 = vperm.xlu0 %1052, %v1045
  %v1054 = vpop.permute.xlu0 %1053
  %vm1056 = vcmask 523264
  %v1058 = vsel %vm1056, %v1042, 0
  %v1061 = vsel %vm1056, %v1043, 0
  %1063 = vmatprep.subr.mxu0 0.0
  %1064 = vmatpush1.msra.mxu0 %v1004
  %1065 = vmatprep.subr.mxu0 0.0
  %1066 = vmatpush1.msra.mxu0 %v1009
  %1067 = vmatprep.subr.mxu0 0.0
  %1068 = vmatpush1.msra.mxu0 %v1014
  %1069 = vmatprep.subr.mxu0 0.0
  %1070 = vmatpush1.msra.mxu0 %v1019
  %1071 = vmatprep.subr.mxu0 0.0
  %1072 = vmatpush1.msra.mxu0 %v1024
  %1073 = vmatprep.subr.mxu0 0.0
  %1074 = vmatpush1.msra.mxu0 %v1029
  %1075 = vmatprep.subr.mxu0 0.0
  %1076 = vmatpush1.msra.mxu0 %v1034
  %1077 = vmatprep.subr.mxu0 0.0
  %1078 = vmatpush1.msra.mxu0 %v1039
  %1079 = vmatprep.subr.mxu0 0.0
  %1080 = vmatpush1.msra.mxu0 0.0
  %1081 = vmatprep.subr.mxu0 0.0
  %1082 = vmatpush1.msra.mxu0 0.0
  %1083 = vmatprep.subr.mxu0 0.0
  %1084 = vmatpush1.msra.mxu0 0.0
  %1085 = vmatprep.subr.mxu0 0.0
  %1086 = vmatpush1.msra.mxu0 0.0
  %1087 = vmatprep.subr.mxu0 0.0
  %1088 = vmatpush1.msra.mxu0 0.0
  %1089 = vmatprep.subr.mxu0 0.0
  %1090 = vmatpush1.msra.mxu0 0.0
  %1091 = vmatprep.subr.mxu0 0.0
  %1092 = vmatpush1.msra.mxu0 0.0
  %1093 = vmatprep.subr.mxu0 0.0
  %1094 = vmatpush1.msra.mxu0 0.0
  %1095 = vmatprep.subr.mxu0 0.0
  %1096 = vmatpush1.msra.mxu0 0.0
  %1097 = vmatprep.subr.mxu0 0.0
  %1098 = vmatpush1.msra.mxu0 0.0
  %1099 = vmatprep.subr.mxu0 0.0
  %1100 = vmatpush1.msra.mxu0 0.0
  %1101 = vmatprep.subr.mxu0 0.0
  %1102 = vmatpush1.msra.mxu0 0.0
  %1103 = vmatprep.subr.mxu0 0.0
  %1104 = vmatpush1.msra.mxu0 0.0
  %1105 = vmatprep.subr.mxu0 0.0
  %1106 = vmatpush1.msra.mxu0 0.0
  %1107 = vmatprep.subr.mxu0 0.0
  %1108 = vmatpush1.msra.mxu0 0.0
  %1109 = vmatprep.subr.mxu0 0.0
  %1110 = vmatpush1.msra.mxu0 0.0
  %1111 = vmatprep.subr.mxu0 0.0
  %1112 = vmatpush1.msra.mxu0 0.0
  %1113 = vmatprep.subr.mxu0 0.0
  %1114 = vmatpush1.msra.mxu0 0.0
  %1115 = vmatprep.subr.mxu0 0.0
  %1116 = vmatpush1.msra.mxu0 0.0
  %1117 = vmatprep.subr.mxu0 0.0
  %1118 = vmatpush1.msra.mxu0 0.0
  %1119 = vmatprep.subr.mxu0 0.0
  %1120 = vmatpush1.msra.mxu0 0.0
  %1121 = vmatprep.subr.mxu0 0.0
  %1122 = vmatpush1.msra.mxu0 0.0
  %1123 = vmatprep.subr.mxu0 0.0
  %1124 = vmatpush1.msra.mxu0 0.0
  %1125 = vmatprep.subr.mxu0 0.0
  %1126 = vmatpush1.msra.mxu0 0.0
  %1127 = vmatprep.mubr.f32.mxu0 0.0
  %1128 = vmatmul.mubr.f32.gmra.mrb[0].mxu0 %v1058
  %v1129 = vpop.f32.mrb[0].mxu0
  %v1130 = vadd.f32 %v1049, %v1129
  %v1131 = vpop.f32.mrb[0].mxu0
  %1132 = vmatprep.mubr.f32.mxu0 0.0
  %1133 = vmatmul.mubr.f32.gmra.mrb[0].mxu0 %v1061
  %v1134 = vpop.f32.mrb[0].mxu0
  %v1135 = vadd.f32 %v1054, %v1134
  %v1136 = vpop.f32.mrb[0].mxu0
  %1137 = vdwg.mxu0
  %vm1138 = vcmask 15360
  %1139 = vst.msk [vmem:[%s8] sm:$0xff] %vm1138, %v1130
  %vm1140 = vcmask 9216
  %1141 = vst.msk [vmem:[%s8 + $0x8] sm:$0x3] %vm1140, %v1135
  // Predicated region
  $region34: #{cnn_classifier_forward.1} parent=0 // pred_check
    _
  $region35: #{cnn_classifier_forward.1} parent=0 // pred_check_branch
    %1143 = sbr.rel (0) target = $region37
  $region36: #{cnn_classifier_forward.1} parent=0 // pred_region
    _
  $region37: #{cnn_classifier_forward.1} parent=0 // pred_fallthru
    _
  // Predicated region
  $region38: #{cnn_classifier_forward.1} parent=0 // pred_check
    _
  $region39: #{cnn_classifier_forward.1} parent=0 // pred_check_branch
    %1145 = sbr.rel (0) target = $region41
  $region40: #{cnn_classifier_forward.1} parent=0 // pred_region
    _
  $region41: #{cnn_classifier_forward.1} parent=0 // pred_fallthru
    _

</llo_original>
